<compile_context>
chip_gen: v7x
topology: tpu7x:2x2x1
jax: 0.10.0
libtpu: 0.0.40
codegen_flags: <defaults>
</compile_context>

<pallas_src>
import functools

import jax
import jax.numpy as jnp
from jax.experimental import pallas as pl
from jax.experimental.pallas import tpu as pltpu

# config.data.train.segmentation_net.loss_lambda — synthetic deterministic value
LOSS_LAMBDA = 1.0


def _ce_partial_kernel(logits_ref, labels_ref, out_ref, *, hw, tile_hw):
    """Accumulate per-pixel cross-entropy into a lane-dense partial-sum block.

    logits_ref: (1, C, T)  logits tile (channels on sublanes, pixels on lanes)
    labels_ref: (1, 1, T)  integer labels tile (native dtype, cast here)
    out_ref:    (1, 1, T)  f32 accumulator, resident across the inner tile axis
    """
    inner = pl.program_id(2)

    # Initialize the per-(batch, outer-chunk) accumulator on the first tile.
    @pl.when(inner == 0)
    def _():
        out_ref[...] = jnp.zeros_like(out_ref)

    # Global pixel index of each lane -> ragged-tail mask (no wrapper pad).
    tile_idx = pl.program_id(1) * pl.num_programs(2) + inner
    start = tile_idx * tile_hw
    lane = jax.lax.broadcasted_iota(jnp.int32, (1, tile_hw), 1)
    valid = (start + lane) < hw                                          # (1, T)

    x = logits_ref[0].astype(jnp.float32)                                # (C, T)
    # Zero garbage lanes before max/exp so the tail can't produce inf/NaN.
    x = jnp.where(valid, x, 0.0)

    # Numerically stable log-sum-exp over the channel (sublane) axis.
    m = jnp.max(x, axis=0, keepdims=True)                                # (1, T)
    lse = jnp.log(jnp.sum(jnp.exp(x - m), axis=0, keepdims=True)) + m    # (1, T)

    # Gather the logit at the label index via a broadcast channel-iota match.
    labels = labels_ref[0].astype(jnp.int32)                             # (1, T)
    c_iota = jax.lax.broadcasted_iota(jnp.int32, (x.shape[0], 1), 0)     # (C, 1)
    x_label = jnp.sum(jnp.where(c_iota == labels, x, 0.0),
                      axis=0, keepdims=True)                             # (1, T)

    # Accumulate per-pixel NLL; masked lanes contribute zero.
    out_ref[...] += ((lse - x_label) * valid.astype(jnp.float32))[None]  # (1,1,T)


def _choose_tile_hw(hw, c, logit_bytes, label_bytes,
                    vmem_budget_bytes=24 * 1024 * 1024,
                    max_tile=256 * 1024):
    """Pick a lane-dense pixel tile sized against a VMEM budget that includes
    double-buffered inputs, the resident f32 accumulator and the in-kernel
    f32 (C, T) temporaries (upcast copy / exp / select)."""
    per_pixel = 2 * (c * logit_bytes + label_bytes) + 4 + 3 * c * 4
    fit = max(128, (vmem_budget_bytes // per_pixel) // 128 * 128)
    tile = int(min(fit, max_tile))
    if tile >= hw:
        # Single full-extent tile: block dim == array dim is always legal,
        # even when HW is not a multiple of 128.
        return int(hw)
    return tile


def segmentation_loss(output_segmentation, gt_segmentation, tile_hw=None):
    """output_segmentation: (N, C, H, W) float logits (NCHW, like PyTorch)
       gt_segmentation:     (N, 1, H, W) integer labels (any int dtype)
       returns scalar float32 loss = mean CE * LOSS_LAMBDA
    """
    N, C, H, W = output_segmentation.shape
    HW = H * W
    P = N * HW

    # Free reshapes only: no transpose, no pad, no dtype-cast pass in HBM.
    logits = output_segmentation.reshape(N, C, HW)
    labels = gt_segmentation.reshape(N, 1, HW)   # native int dtype, cast in-kernel

    logit_bytes = jnp.dtype(logits.dtype).itemsize
    label_bytes = jnp.dtype(labels.dtype).itemsize

    if tile_hw is None:
        tile_hw = _choose_tile_hw(HW, C, logit_bytes, label_bytes)
    tile_hw = int(min(tile_hw, HW))

    total_tiles = pl.cdiv(HW, tile_hw)

    # Split the pixel axis into two parallel outer chunks when the batch axis
    # alone can't feed both v7x TensorCores; neutral on single-TC chips.
    n_outer = 2 if (N == 1 and total_tiles >= 2 and total_tiles % 2 == 0) else 1
    inner_tiles = total_tiles // n_outer

    grid = (N, n_outer, inner_tiles)

    kernel = functools.partial(_ce_partial_kernel, hw=HW, tile_hw=tile_hw)

    cost = pl.CostEstimate(
        flops=6 * P * C,
        transcendentals=P * (C + 1),
        bytes_accessed=int(N * C * HW * logit_bytes      # logits read (1 pass)
                           + N * HW * label_bytes        # labels read
                           + N * n_outer * tile_hw * 4), # partial-sum write
    )

    partial_sums = pl.pallas_call(
        kernel,
        out_shape=jax.ShapeDtypeStruct((N * n_outer, 1, tile_hw), jnp.float32),
        grid=grid,
        in_specs=[
            pl.BlockSpec((1, C, tile_hw),
                         lambda n, o, i: (n, 0, o * inner_tiles + i)),
            pl.BlockSpec((1, 1, tile_hw),
                         lambda n, o, i: (n, 0, o * inner_tiles + i)),
        ],
        out_specs=pl.BlockSpec((1, 1, tile_hw),
                               lambda n, o, i: (n * n_outer + o, 0, 0)),
        compiler_params=pltpu.CompilerParams(
            dimension_semantics=("parallel", "parallel", "arbitrary"),
            vmem_limit_bytes=48 * 1024 * 1024,
        ),
        cost_estimate=cost,
    )(logits, labels)

    mean_ce = jnp.sum(partial_sums) / jnp.float32(P)
    return mean_ce * jnp.float32(LOSS_LAMBDA)


def _reference_loss(output_segmentation, gt_segmentation):
    """Pure-JAX reference matching torch.nn.CrossEntropyLoss (mean reduction)."""
    N, C, H, W = output_segmentation.shape
    logits = jnp.transpose(output_segmentation, (0, 2, 3, 1)).reshape(-1, C)
    labels = gt_segmentation[:, 0].astype(jnp.int32).reshape(-1)
    logp = jax.nn.log_softmax(logits.astype(jnp.float32), axis=-1)
    nll = -jnp.take_along_axis(logp, labels[:, None], axis=-1)[:, 0]
    return jnp.mean(nll) * jnp.float32(LOSS_LAMBDA)


if __name__ == "__main__":
    key = jax.random.PRNGKey(0)
    ks = jax.random.split(key, 8)

    # 1) Small aligned case: single full tile, no masking path.
    N, C, H, W = 2, 4, 16, 16
    out1 = jax.random.normal(ks[0], (N, C, H, W), dtype=jnp.float32)
    gt1 = jax.random.randint(ks[1], (N, 1, H, W), 0, C, dtype=jnp.int32)
    loss1 = jax.block_until_ready(segmentation_loss(out1, gt1))
    ref1 = _reference_loss(out1, gt1)
    assert jnp.allclose(loss1, ref1, rtol=1e-5, atol=1e-5), (loss1, ref1)

    # 2) Non-128-multiple spatial size: full-extent tile, no pad pass.
    H2 = W2 = 15
    out2 = jax.random.normal(ks[2], (N, C, H2, W2), dtype=jnp.float32)
    gt2 = jax.random.randint(ks[3], (N, 1, H2, W2), 0, C, dtype=jnp.int32)
    loss2 = jax.block_until_ready(segmentation_loss(out2, gt2))
    ref2 = _reference_loss(out2, gt2)
    assert jnp.allclose(loss2, ref2, rtol=1e-5, atol=1e-5), (loss2, ref2)

    # 3) N=1, multi-tile: exercises the second parallel (outer-chunk) axis and
    #    the resident accumulator over the inner reduction axis.
    out3 = jax.random.normal(ks[4], (1, C, 16, 32), dtype=jnp.float32)
    gt3 = jax.random.randint(ks[5], (1, 1, 16, 32), 0, C, dtype=jnp.int32)
    loss3 = jax.block_until_ready(segmentation_loss(out3, gt3, tile_hw=128))
    ref3 = _reference_loss(out3, gt3)
    assert jnp.allclose(loss3, ref3, rtol=1e-5, atol=1e-5), (loss3, ref3)

    # 4) Ragged multi-tile: partial last block masked in-kernel (no jnp.pad).
    out4 = jax.random.normal(ks[6], (1, C, 16, 33), dtype=jnp.float32)
    gt4 = jax.random.randint(ks[7], (1, 1, 16, 33), 0, C, dtype=jnp.int32)
    loss4 = jax.block_until_ready(segmentation_loss(out4, gt4, tile_hw=128))
    ref4 = _reference_loss(out4, gt4)
    assert jnp.allclose(loss4, ref4, rtol=1e-5, atol=1e-5), (loss4, ref4)

    # TODO(synk): accumulateLoss / printLoss / clearLoss (AverageMeter bookkeeping
    # + TensorBoard writer logging) are host-side training utilities with no
    # kernel equivalent.
    print("KERNEL_OK")
</pallas_src>

<mosaic_0001>
module attributes {stable_mosaic.version = 11 : i64} {
  func.func @_ce_partial_kernel(%arg0: i32, %arg1: i32, %arg2: i32, %arg3: memref<1x4x256xf32, #tpu.memory_space<vmem>>, %arg4: memref<1x1x256xi32, #tpu.memory_space<vmem>>, %arg5: memref<1x1x256xf32, #tpu.memory_space<vmem>>) attributes {dimension_semantics = [#tpu.dimension_semantics<parallel>, #tpu.dimension_semantics<parallel>, #tpu.dimension_semantics<arbitrary>], iteration_bounds = array<i64: 2, 1, 1>, scalar_prefetch = 0 : i64, scratch_operands = 0 : i64, tpu.core_type = #tpu.core_type<tc>, window_params = [{transform_indices = @transform_0, window_bounds = array<i64: 1, 4, 256>}, {transform_indices = @transform_1, window_bounds = array<i64: 1, 1, 256>}, {transform_indices = @transform_2, window_bounds = array<i64: 1, 1, 256>}]} {
    %c0_i32 = arith.constant 0 : i32
    %0 = arith.cmpi eq, %arg2, %c0_i32 : i32
    %1 = arith.extui %0 : i1 to i32
    %c0_i32_0 = arith.constant 0 : i32
    %2 = arith.cmpi ne, %1, %c0_i32_0 : i32
    scf.if %2 {
      %cst_17 = arith.constant 0.000000e+00 : f32
      %44 = vector.broadcast %cst_17 : f32 to vector<1x1x256xf32>
      %c0_18 = arith.constant 0 : index
      %c0_19 = arith.constant 0 : index
      %c0_20 = arith.constant 0 : index
      %45 = vector.load %arg5[%c0_18, %c0_19, %c0_20] : memref<1x1x256xf32, #tpu.memory_space<vmem>>, vector<1x1x256xf32>
      tpu.vector_store %arg5[%c0_18, %c0_19, %c0_20], %44 {strides = array<i32>} : memref<1x1x256xf32, #tpu.memory_space<vmem>>, vector<1x1x256xf32>,
    } else {
    }
    %c1_i32 = arith.constant 1 : i32
    %3 = arith.muli %arg1, %c1_i32 : i32
    %4 = arith.addi %3, %arg2 : i32
    %c256_i32 = arith.constant 256 : i32
    %5 = arith.muli %4, %c256_i32 : i32
    %6 = tpu.iota {dimensions = array<i32: 1>} : vector<1x256xi32>
    %7 = vector.broadcast %5 : i32 to vector<1x256xi32>
    %8 = arith.addi %7, %6 : vector<1x256xi32>
    %c256_i32_1 = arith.constant 256 : i32
    %9 = vector.broadcast %c256_i32_1 : i32 to vector<1x256xi32>
    %10 = arith.cmpi slt, %8, %9 : vector<1x256xi32>
    %c0 = arith.constant 0 : index
    %c0_2 = arith.constant 0 : index
    %c0_3 = arith.constant 0 : index
    %11 = vector.load %arg3[%c0, %c0_2, %c0_3] : memref<1x4x256xf32, #tpu.memory_space<vmem>>, vector<1x4x256xf32>
    %12 = vector.shape_cast %11 : vector<1x4x256xf32> to vector<4x256xf32>
    %cst = arith.constant 0.000000e+00 : f32
    %13 = vector.shape_cast %10 : vector<1x256xi1> to vector<1x256xi1>
    %14 = vector.broadcast %13 : vector<1x256xi1> to vector<4x256xi1>
    %15 = vector.broadcast %cst : f32 to vector<4x256xf32>
    %16 = arith.select %14, %12, %15 : vector<4x256xi1>, vector<4x256xf32>
    %cst_4 = arith.constant dense<0xFF800000> : vector<256xf32>
    %17 = vector.multi_reduction <maximumf>, %16, %cst_4 [0] : vector<4x256xf32> to vector<256xf32>
    %18 = vector.shape_cast %17 : vector<256xf32> to vector<1x256xf32>
    %19 = vector.broadcast %18 : vector<1x256xf32> to vector<4x256xf32>
    %20 = arith.subf %16, %19 : vector<4x256xf32>
    %21 = math.exp %20 : vector<4x256xf32>
    %cst_5 = arith.constant dense<0.000000e+00> : vector<256xf32>
    %22 = vector.multi_reduction <add>, %21, %cst_5 [0] : vector<4x256xf32> to vector<256xf32>
    %23 = vector.shape_cast %22 : vector<256xf32> to vector<1x256xf32>
    %24 = math.log %23 : vector<1x256xf32>
    %25 = arith.addf %24, %18 : vector<1x256xf32>
    %c0_6 = arith.constant 0 : index
    %c0_7 = arith.constant 0 : index
    %c0_8 = arith.constant 0 : index
    %26 = vector.load %arg4[%c0_6, %c0_7, %c0_8] : memref<1x1x256xi32, #tpu.memory_space<vmem>>, vector<1x1x256xi32>
    %27 = vector.shape_cast %26 : vector<1x1x256xi32> to vector<1x256xi32>
    %28 = tpu.iota {dimensions = array<i32: 0>} : vector<4x1xi32>
    %29 = vector.broadcast %28 : vector<4x1xi32> to vector<4x256xi32>
    %30 = vector.broadcast %27 : vector<1x256xi32> to vector<4x256xi32>
    %31 = arith.cmpi eq, %29, %30 : vector<4x256xi32>
    %cst_9 = arith.constant 0.000000e+00 : f32
    %32 = vector.broadcast %cst_9 : f32 to vector<4x256xf32>
    %33 = arith.select %31, %16, %32 : vector<4x256xi1>, vector<4x256xf32>
    %cst_10 = arith.constant dense<0.000000e+00> : vector<256xf32>
    %34 = vector.multi_reduction <add>, %33, %cst_10 [0] : vector<4x256xf32> to vector<256xf32>
    %35 = vector.shape_cast %34 : vector<256xf32> to vector<1x256xf32>
    %c0_11 = arith.constant 0 : index
    %c0_12 = arith.constant 0 : index
    %c0_13 = arith.constant 0 : index
    %36 = vector.load %arg5[%c0_11, %c0_12, %c0_13] : memref<1x1x256xf32, #tpu.memory_space<vmem>>, vector<1x1x256xf32>
    %37 = arith.subf %25, %35 : vector<1x256xf32>
    %38 = arith.extui %10 : vector<1x256xi1> to vector<1x256xi32>
    %39 = arith.sitofp %38 : vector<1x256xi32> to vector<1x256xf32>
    %40 = arith.mulf %37, %39 : vector<1x256xf32>
    %41 = vector.shape_cast %40 : vector<1x256xf32> to vector<1x1x256xf32>
    %42 = arith.addf %36, %41 : vector<1x1x256xf32>
    %c0_14 = arith.constant 0 : index
    %c0_15 = arith.constant 0 : index
    %c0_16 = arith.constant 0 : index
    %43 = vector.load %arg5[%c0_14, %c0_15, %c0_16] : memref<1x1x256xf32, #tpu.memory_space<vmem>>, vector<1x1x256xf32>
    tpu.vector_store %arg5[%c0_14, %c0_15, %c0_16], %42 {strides = array<i32>} : memref<1x1x256xf32, #tpu.memory_space<vmem>>, vector<1x1x256xf32>,
    return
  }
  func.func @transform_0(%arg0: i32, %arg1: i32, %arg2: i32) -> (i32, i32, i32) {
    %c1_i32 = arith.constant 1 : i32
    %0 = arith.muli %arg1, %c1_i32 : i32
    %1 = arith.addi %0, %arg2 : i32
    %c0_i32 = arith.constant 0 : i32
    %c0_i32_0 = arith.constant 0 : i32
    return %arg0, %c0_i32, %1 : i32, i32, i32
  }
  func.func @transform_1(%arg0: i32, %arg1: i32, %arg2: i32) -> (i32, i32, i32) {
    %c1_i32 = arith.constant 1 : i32
    %0 = arith.muli %arg1, %c1_i32 : i32
    %1 = arith.addi %0, %arg2 : i32
    %c0_i32 = arith.constant 0 : i32
    %c0_i32_0 = arith.constant 0 : i32
    return %arg0, %c0_i32, %1 : i32, i32, i32
  }
  func.func @transform_2(%arg0: i32, %arg1: i32, %arg2: i32) -> (i32, i32, i32) {
    %c1_i32 = arith.constant 1 : i32
    %0 = arith.muli %arg0, %c1_i32 : i32
    %1 = arith.addi %0, %arg1 : i32
    %c0_i32 = arith.constant 0 : i32
    %c0_i32_0 = arith.constant 0 : i32
    %c0_i32_1 = arith.constant 0 : i32
    return %1, %c0_i32, %c0_i32_0 : i32, i32, i32
  }
}

</mosaic_0001>

<llo_original>
// kernel: tpu_custom_call.1
$region0: #{tpu_custom_call.1}
  #allocation0 [shape = 'u32[]', space=smem, size = 0x4, offset = 0x4, fixed_abs, tag = 'smem constant byte address 0x4 - core index']
  #allocation1 [shape = 'u32[144,128]{1,0:T(1,128)}', space=vmem, size = 0x12000, scoped, tag = 'internal scratch']
  %s0 = inlined_call_operand.hbm [shape: f32[2,4,256], index: 0, kind: input, shape index: {}]
  %s1 = inlined_call_operand.hbm [shape: s32[2,1,256], index: 1, kind: input, shape index: {}]
  %s2 = inlined_call_operand.hbm [shape: f32[2,1,256], index: 2, kind: output, shape index: {}]
  %s3 = sld [smem:[#allocation0]]
  $region53: #{tpu_custom_call.1} parent=0
    _
  %s5 = ssub.s32 1, %s3
  %s6 = scalar_select 0, %s5, %s3
  $region1: #{tpu_custom_call.1} parent=0
    #allocation2 [shape = 'u8[8192]{0}', space=vmem, size = 0x2000, scoped, tag = 'input window, operand 0']
    #allocation3 [shape = 's32[2]{0}', space=sflag, size = 0x8, scoped, tag = 'scoped memory for tpu_custom_call.1']
    #allocation4 [shape = 's32[2]{0}', space=sflag, size = 0x8, scoped, tag = 'scoped memory for tpu_custom_call.1']
    #allocation5 [shape = 'u8[2048]{0}', space=vmem, size = 0x800, scoped, tag = 'input window, operand 1']
    #allocation6 [shape = 's32[2]{0}', space=sflag, size = 0x8, scoped, tag = 'scoped memory for tpu_custom_call.1']
    #allocation7 [shape = 'u8[2048]{0}', space=vmem, size = 0x800, scoped, tag = 'output window, operand 0']
    %7 = vsyncpa [#allocation3], 0
    %s8 = scalar_lea.sflag [#allocation3], 1
    %9 = vsyncpa %s8, 0
    %10 = vsyncpa [#allocation6], 0
    %s11 = scalar_lea.sflag [#allocation6], 1
    %12 = vsyncpa %s11, 0
    %13 = vsyncpa [#allocation4], 0
    %s14 = scalar_lea.sflag [#allocation4], 1
    %15 = vsyncpa %s14, 0
    loop: start=0, step=1, limit=4
    $region2: #{tpu_custom_call.1} parent=1 // loop_pre_header
      _
    $region3: #{tpu_custom_call.1} parent=1 // loop_header
      %s17 = sphi 0, %s21
      %p18 = scmp.ge.s32.totalorder %s17, 4
      %s24 = sphi 0, %s43
      %s25 = sphi 0, %s39
      %s26 = sphi 0, %s35
      %s27 = sphi 0, %s24
      %s28 = sphi 0, %s25
      %s29 = sphi 0, %s26
      %s30 = sphi 0, %s27
      %s31 = sphi 0, %s28
      %s32 = sphi 0, %s29
      %s50 = sphi 0, %s52
      %s53 = sphi 0, %s50
      %s54 = sphi 0, %s53
      %s70 = sphi 0, %s54
      %s80 = sphi 0, %s82
      %s83 = sphi 0, %s80
      %s84 = sphi 0, %s83
      %s100 = sphi 0, %s84
      %s108 = sphi 0, %s110
      %s111 = sphi 0, %s108
      %s112 = sphi 0, %s111
      %s128 = sphi 0, %s112
    $region4: #{tpu_custom_call.1} parent=1 // loop_header_branch
      %20 = sbr.rel (%p18) target = $region8
    $region5: #{tpu_custom_call.1} parent=1 // loop_body
      %s22 = ssub.s32 %s17, 1
      %s23 = ssub.s32 %s17, 2
      %s33 = sadd.s32 1, %s26
      %p34 = scmp.ge.s32.totalorder %s33, 1
      %s35 = scalar_select %p34, 0, %s33
      %s36 = sadd.s32 1, %s25
      %s37 = scalar_select %p34, %s36, %s25
      %p38 = scmp.ge.s32.totalorder %s37, 1
      %s39 = scalar_select %p38, 0, %s37
      %s40 = sadd.s32 1, %s24
      %s41 = scalar_select %p38, %s40, %s24
      %p42 = scmp.ge.s32.totalorder %s41, 2
      %s43 = scalar_select %p42, 0, %s41
      %s44 = sadd.s32 %s25, %s26
      %s45 = sadd.s32 %s39, %s35
      %s46 = ssub.s32 %s24, %s43
      %s47 = ssub.s32 %s44, %s45
      %s48 = sor.u32 %s46, %s47
      %p49 = scmp.eq.s32.totalorder %s48, 0
      %s51 = sadd.s32 %s50, 1
      %s52 = scalar_select %p49, %s50, %s51
      %p55 = pneg %p49
      %p56 = scmp.eq.s32.totalorder %s17, 1
      %p57 = por %p55, %p56
      %p58 = scmp.ne.s32.totalorder %s50, %s53
      %p59 = scmp.eq.s32.totalorder %s17, 0
      %p60 = por %p58, %p59
      %p61 = scmp.ne.s32.totalorder %s50, %s53
      %p62 = scmp.eq.s32.totalorder %s22, 1
      %p63 = por %p61, %p62
      %p64 = scmp.ne.s32.totalorder %s53, %s54
      %p65 = scmp.eq.s32.totalorder %s22, 0
      %p66 = por %p64, %p65
      %p67 = scmp.ne.s32.totalorder %s53, %s54
      %p68 = scmp.eq.s32.totalorder %s23, 1
      %p69 = por %p67, %p68
      %p71 = scmp.ne.s32.totalorder %s54, %s70
      %p72 = scmp.eq.s32.totalorder %s23, 0
      %p73 = por %p71, %p72
      %s74 = sadd.s32 %s25, %s26
      %s75 = sadd.s32 %s39, %s35
      %s76 = ssub.s32 %s24, %s43
      %s77 = ssub.s32 %s74, %s75
      %s78 = sor.u32 %s76, %s77
      %p79 = scmp.eq.s32.totalorder %s78, 0
      %s81 = sadd.s32 %s80, 1
      %s82 = scalar_select %p79, %s80, %s81
      %p85 = pneg %p79
      %p86 = scmp.eq.s32.totalorder %s17, 1
      %p87 = por %p85, %p86
      %p88 = scmp.ne.s32.totalorder %s80, %s83
      %p89 = scmp.eq.s32.totalorder %s17, 0
      %p90 = por %p88, %p89
      %p91 = scmp.ne.s32.totalorder %s80, %s83
      %p92 = scmp.eq.s32.totalorder %s22, 1
      %p93 = por %p91, %p92
      %p94 = scmp.ne.s32.totalorder %s83, %s84
      %p95 = scmp.eq.s32.totalorder %s22, 0
      %p96 = por %p94, %p95
      %p97 = scmp.ne.s32.totalorder %s83, %s84
      %p98 = scmp.eq.s32.totalorder %s23, 1
      %p99 = por %p97, %p98
      %p101 = scmp.ne.s32.totalorder %s84, %s100
      %p102 = scmp.eq.s32.totalorder %s23, 0
      %p103 = por %p101, %p102
      %s104 = sadd.s32 %s24, %s25
      %s105 = sadd.s32 %s43, %s39
      %s106 = ssub.s32 %s104, %s105
      %p107 = scmp.eq.s32.totalorder %s106, 0
      %s109 = sadd.s32 %s108, 1
      %s110 = scalar_select %p107, %s108, %s109
      %p113 = pneg %p107
      %p114 = scmp.eq.s32.totalorder %s17, 1
      %p115 = por %p113, %p114
      %p116 = scmp.ne.s32.totalorder %s108, %s111
      %p117 = scmp.eq.s32.totalorder %s17, 0
      %p118 = por %p116, %p117
      %p119 = scmp.ne.s32.totalorder %s108, %s111
      %p120 = scmp.eq.s32.totalorder %s22, 1
      %p121 = por %p119, %p120
      %p122 = scmp.ne.s32.totalorder %s111, %s112
      %p123 = scmp.eq.s32.totalorder %s22, 0
      %p124 = por %p122, %p123
      %p125 = scmp.ne.s32.totalorder %s111, %s112
      %p126 = scmp.eq.s32.totalorder %s23, 1
      %p127 = por %p125, %p126
      %p129 = scmp.ne.s32.totalorder %s112, %s128
      %p130 = scmp.eq.s32.totalorder %s23, 0
      %p131 = por %p129, %p130
      %p132 = scmp.le.s32.totalorder 1, %s17
      %p133 = scmp.lt.s32.totalorder %s17, 3
      %p134 = pnand %p132, %p133
      %p135 = pneg %p134
      // Predicated region
      $region9: #{tpu_custom_call.1} parent=5 // pred_check
        _
      $region10: #{tpu_custom_call.1} parent=5 // pred_check_branch
        %137 = sbr.rel (%p134) target = $region12
      $region11: #{tpu_custom_call.1} parent=5 // pred_region
        %s138 = ssub.s32 %s17, 1
      $region12: #{tpu_custom_call.1} parent=5 // pred_fallthru
        _
      %p139 = scmp.lt.s32.totalorder %s17, 2
      // Predicated region
      $region13: #{tpu_custom_call.1} parent=5 // pred_check
        %p140 = pneg %p139
      $region14: #{tpu_custom_call.1} parent=5 // pred_check_branch
        %142 = sbr.rel (%p140) target = $region16
      $region15: #{tpu_custom_call.1} parent=5 // pred_region
        // Predicated region
        $region17: #{tpu_custom_call.1} parent=15 // pred_check
          %p143 = pneg %p60
        $region18: #{tpu_custom_call.1} parent=15 // pred_check_branch
          %145 = sbr.rel (%p143) target = $region20
        $region19: #{tpu_custom_call.1} parent=15 // pred_region
          %s146 = sand.u32 %s50, 1
          %s147 = scalar_lea.sflag [#allocation3], %s146
          %s148 = sand.u32 %s50, 1
          %s149 = smul.addr %s148, 8
          %s150 = scalar_lea.vmem [#allocation2], %s149
          %s151 = sadd.s32 %s25, %s26
          %s152 = smul.u32 2, %s151
          %s154 = ssub.s32 128, 128
          %155 = vsyncadd %s147, %s154
          %s156 = smul.addr %s24, 2
          %s157 = sadd.s32 %s152, %s156
          %s158 = smul.addr %s157, 64
          %s159 = scalar_lea.hbm %s0, %s158
          %s161 = sshll.u32 %s150, 4
          %s162 = int_to_ptr.vmem [resolvable:$true] %s161
          %164 = dma.hbm_to_vmem [thread:$0]  %s159, 128, %s162, %s147
        $region20: #{tpu_custom_call.1} parent=15 // pred_fallthru
          _
        // Predicated region
        $region21: #{tpu_custom_call.1} parent=15 // pred_check
          %p165 = pneg %p90
        $region22: #{tpu_custom_call.1} parent=15 // pred_check_branch
          %167 = sbr.rel (%p165) target = $region24
        $region23: #{tpu_custom_call.1} parent=15 // pred_region
          %s168 = sand.u32 %s80, 1
          %s169 = scalar_lea.sflag [#allocation6], %s168
          %s170 = sand.u32 %s80, 1
          %s171 = smul.addr %s170, 2
          %s172 = scalar_lea.vmem [#allocation5], %s171
          %s173 = sadd.s32 %s25, %s26
          %s174 = smul.u32 2, %s173
          %s176 = ssub.s32 32, 32
          %177 = vsyncadd %s169, %s176
          %s178 = smul.addr %s24, 2
          %s179 = sadd.s32 %s174, %s178
          %s180 = smul.addr %s179, 16
          %s181 = scalar_lea.hbm %s1, %s180
          %s183 = sshll.u32 %s172, 4
          %s184 = int_to_ptr.vmem [resolvable:$true] %s183
          %186 = dma.hbm_to_vmem [thread:$0]  %s181, 32, %s184, %s169
        $region24: #{tpu_custom_call.1} parent=15 // pred_fallthru
          _
      $region16: #{tpu_custom_call.1} parent=5 // pred_fallthru
        _
      %p187 = scmp.le.s32.totalorder 1, %s17
      %p188 = scmp.lt.s32.totalorder %s17, 3
      %p189 = pnand %p187, %p188
      %p190 = pneg %p189
      // Predicated region
      $region25: #{tpu_custom_call.1} parent=5 // pred_check
        _
      $region26: #{tpu_custom_call.1} parent=5 // pred_check_branch
        %192 = sbr.rel (%p189) target = $region28
      $region27: #{tpu_custom_call.1} parent=5 // pred_region
        %s193 = ssub.s32 %s17, 1
        %s194 = sand.u32 %s53, 1
        %s195 = scalar_lea.sflag [#allocation3], %s194
        %s196 = sand.u32 %s53, 1
        %s197 = smul.addr %s196, 8
        %s198 = scalar_lea.vmem [#allocation2], %s197
        // Predicated region
        $region29: #{tpu_custom_call.1} parent=27 // pred_check
          %p199 = pneg %p66
        $region30: #{tpu_custom_call.1} parent=27 // pred_check_branch
          %201 = sbr.rel (%p199) target = $region32
        $region31: #{tpu_custom_call.1} parent=27 // pred_region
          %202 = dma.done %s195, 128
        $region32: #{tpu_custom_call.1} parent=27 // pred_fallthru
          _
        %s203 = sand.u32 %s83, 1
        %s204 = scalar_lea.sflag [#allocation6], %s203
        %s205 = sand.u32 %s83, 1
        %s206 = smul.addr %s205, 2
        %s207 = scalar_lea.vmem [#allocation5], %s206
        // Predicated region
        $region33: #{tpu_custom_call.1} parent=27 // pred_check
          %p208 = pneg %p96
        $region34: #{tpu_custom_call.1} parent=27 // pred_check_branch
          %210 = sbr.rel (%p208) target = $region36
        $region35: #{tpu_custom_call.1} parent=27 // pred_region
          %211 = dma.done %s204, 32
        $region36: #{tpu_custom_call.1} parent=27 // pred_fallthru
          _
        %s212 = sand.u32 %s53, 1
        %s213 = scalar_lea.sflag [#allocation3], %s212
        %s214 = sand.u32 %s53, 1
        %s215 = smul.addr %s214, 8
        %s216 = scalar_lea.vmem [#allocation2], %s215
        %p217 = pneg %p66
        %p218 = pneg %p63
        %s219 = sand.u32 %s83, 1
        %s220 = scalar_lea.sflag [#allocation6], %s219
        %s221 = sand.u32 %s83, 1
        %s222 = smul.addr %s221, 2
        %s223 = scalar_lea.vmem [#allocation5], %s222
        %p224 = pneg %p96
        %p225 = pneg %p93
        %p226 = pneg %p124
        %p227 = pneg %p121
        %s228 = sand.u32 %s111, 1
        %s229 = scalar_lea.sflag [#allocation4], %s228
        %s230 = sand.u32 %s111, 1
        %s231 = smul.addr %s230, 2
        %s232 = scalar_lea.vmem [#allocation7], %s231
        %s233 = sadd.s32 %s28, %s29
        %s234 = smul.u32 2, %s233
        %s235 = sadd.s32 %s28, %s29
        %s236 = smul.u32 2, %s235
        %s237 = sadd.s32 %s27, %s28
        %p238 = scmp.eq.s32.totalorder %s29, 0
        // Predicated region
        $region37: #{tpu_custom_call.1} parent=27 // pred_check
          %p239 = pneg %p238
        $region38: #{tpu_custom_call.1} parent=27 // pred_check_branch
          %241 = sbr.rel (%p239) target = $region40
        $region39: #{tpu_custom_call.1} parent=27 // pred_region
          %v242 = vlaneseq
          %vm243 = vcmp.ge.s32.totalorder %v242, 0
          %vm244 = vcmp.lt.s32.totalorder %v242, 256
          %vm245 = vmand %vm243, %vm244
          %246 = vst.msk [vmem:[%s232] sm:$0x3] %vm245, 0.0
        $region40: #{tpu_custom_call.1} parent=27 // pred_fallthru
          _
        %s247 = sadd.s32 %s28, %s29
        %s248 = smul.u32 %s247, 256
        %v249 = vlaneseq
        %v250 = vand.u32 %v249, 127
        %v251 = vadd.s32 %v250, 128
        %v252 = vstv %s248
        %v253 = vadd.s32 %v252, %v250
        %v254 = vadd.s32 %v252, %v251
        %vm255 = vcmp.lt.s32.totalorder %v253, 256
        %vm256 = vcmp.lt.s32.totalorder %v254, 256
        %v257 = vld [vmem:[%s198] sm:$0xff]
        %v258 = vsel %vm255, 1, 0
        %v259 = vsel %vm256, 1, 0
        %vm260 = vcmp.eq.s32.totalorder %v258, 1
        %vm261 = vcmp.eq.s32.totalorder %v259, 1
        %v263 = vcombine.high %v257, %v257
        %v265 = vsel %vm260, %v257, 0.0
        %v266 = vsel %vm261, %v263, 0.0
        %vm267 = vcmask 1043456
        %v268 = vsel %vm267, %v265, -inf
        %v269 = vrot.slane %v268, 4
        %v270 = vmax.f32 %v268, %v269
        %v271 = vrot.slane %v270, 2
        %v272 = vmax.f32 %v270, %v271
        %v273 = vrot.slane %v272, 1
        %v274 = vmax.f32 %v272, %v273
        %v275 = vsel %vm267, %v266, -inf
        %v276 = vrot.slane %v275, 4
        %v277 = vmax.f32 %v275, %v276
        %v278 = vrot.slane %v277, 2
        %v279 = vmax.f32 %v277, %v278
        %v280 = vrot.slane %v279, 1
        %v281 = vmax.f32 %v279, %v280
        %v282 = vsub.f32 %v265, %v274
        %v283 = vsub.f32 %v266, %v281
        %v284 = vmul.f32 %v282, 1.442695
        %v285 = vpow.pop %v284
        %v286 = vmul.f32 %v283, 1.442695
        %v287 = vpow.pop %v286
        %v288 = vsel %vm267, %v285, 0.0
        %v289 = vrot.slane %v288, 4
        %v290 = vadd.f32 %v288, %v289
        %v291 = vrot.slane %v290, 2
        %v292 = vadd.f32 %v290, %v291
        %v293 = vrot.slane %v292, 1
        %v294 = vadd.f32 %v292, %v293
        %v295 = vsel %vm267, %v287, 0.0
        %v296 = vrot.slane %v295, 4
        %v297 = vadd.f32 %v295, %v296
        %v298 = vrot.slane %v297, 2
        %v299 = vadd.f32 %v297, %v298
        %v300 = vrot.slane %v299, 1
        %v301 = vadd.f32 %v299, %v300
        %v302 = vlog2.pop %v294
        %v303 = vmul.f32 %v302, 0.6931472
        %v304 = vlog2.pop %v301
        %v305 = vmul.f32 %v304, 0.6931472
        %v306 = vadd.f32 %v303, %v274
        %v307 = vadd.f32 %v305, %v281
        %v308 = vld [vmem:[%s207] sm:$0x3]
        %v309 = vlaneseq
        %v310 = vshrl.u32 %v309, 7
        %v311 = vlaneseq
        %v312 = vshrl.u32 %v311, 7
        %v313 = vsub.s32 0, %v312
        %v314 = vrot.slane %v308, %v313
        %v315 = vlaneseq
        %v316 = vshrl.u32 %v315, 7
        %v317 = vsub.s32 1, %v316
        %v318 = vrot.slane %v308, %v317
        %vm319 = vcmp.eq.s32.totalorder %v310, %v314
        %vm320 = vcmp.eq.s32.totalorder %v310, %v318
        %v321 = vsel %vm319, %v265, 0.0
        %v322 = vsel %vm320, %v266, 0.0
        %v323 = vsel %vm267, %v321, 0.0
        %v324 = vrot.slane %v323, 4
        %v325 = vadd.f32 %v323, %v324
        %v326 = vrot.slane %v325, 2
        %v327 = vadd.f32 %v325, %v326
        %v328 = vrot.slane %v327, 1
        %v329 = vadd.f32 %v327, %v328
        %v330 = vsel %vm267, %v322, 0.0
        %v331 = vrot.slane %v330, 4
        %v332 = vadd.f32 %v330, %v331
        %v333 = vrot.slane %v332, 2
        %v334 = vadd.f32 %v332, %v333
        %v335 = vrot.slane %v334, 1
        %v336 = vadd.f32 %v334, %v335
        %v337 = vld [vmem:[%s232] sm:$0x3]
        %v338 = vsub.f32 %v306, %v329
        %v339 = vsub.f32 %v307, %v336
        %v340 = vcvt.s32.f32 %v258
        %v341 = vcvt.s32.f32 %v259
        %v342 = vmul.f32 %v338, %v340
        %v343 = vmul.f32 %v339, %v341
        %v346 = vcombine.low %v342, %v343
        %v348 = vunpack.c.l.s4 1966171168
        %v349 = vunpack.c.0.s8 %v348
        %v350 = vlaneseq
        %v351 = vshrl.u32 %v350, 7
        %v352 = vsub.s32 %v349, %v351
        %v353 = vrot.slane %v346, %v352
        %v355 = vunpack.c.l.s4 1966171168
        %v356 = vunpack.c.0.s8 %v355
        %v357 = vlaneseq
        %v358 = vshrl.u32 %v357, 7
        %v359 = vsub.s32 %v356, %v358
        %v360 = vrot.slane %v353, %v359
        %v362 = vadd.f32 %v337, %v360
        %v363 = vlaneseq
        %vm364 = vcmp.ge.s32.totalorder %v363, 0
        %vm365 = vcmp.lt.s32.totalorder %v363, 256
        %vm366 = vmand %vm364, %vm365
        %367 = vst.msk [vmem:[%s232] sm:$0x3] %vm366, %v362
        %s368 = sand.u32 %s111, 1
        %s369 = scalar_lea.sflag [#allocation4], %s368
        %s370 = sand.u32 %s111, 1
        %s371 = smul.addr %s370, 2
        %s372 = scalar_lea.vmem [#allocation7], %s371
        // Predicated region
        $region41: #{tpu_custom_call.1} parent=27 // pred_check
          %p373 = pneg %p121
        $region42: #{tpu_custom_call.1} parent=27 // pred_check_branch
          %375 = sbr.rel (%p373) target = $region44
        $region43: #{tpu_custom_call.1} parent=27 // pred_region
          %s376 = sadd.s32 %s27, %s28
          %s378 = ssub.s32 32, 32
          %379 = vsyncadd %s369, %s378
          %s380 = smul.addr %s376, 2
          %s381 = smul.addr %s380, 16
          %s382 = scalar_lea.hbm %s2, %s381
          %s384 = sshll.u32 %s372, 4
          %s385 = int_to_ptr.vmem [resolvable:$true] %s384
          %387 = dma.vmem_to_hbm [thread:$0]  %s385, 32, %s382, %s369
        $region44: #{tpu_custom_call.1} parent=27 // pred_fallthru
          _
      $region28: #{tpu_custom_call.1} parent=5 // pred_fallthru
        _
      %p388 = scmp.le.s32.totalorder 2, %s17
      // Predicated region
      $region45: #{tpu_custom_call.1} parent=5 // pred_check
        %p389 = pneg %p388
      $region46: #{tpu_custom_call.1} parent=5 // pred_check_branch
        %391 = sbr.rel (%p389) target = $region48
      $region47: #{tpu_custom_call.1} parent=5 // pred_region
        %s392 = ssub.s32 %s17, 2
        // Predicated region
        $region49: #{tpu_custom_call.1} parent=47 // pred_check
          %p393 = pneg %p127
        $region50: #{tpu_custom_call.1} parent=47 // pred_check_branch
          %395 = sbr.rel (%p393) target = $region52
        $region51: #{tpu_custom_call.1} parent=47 // pred_region
          %s396 = sand.u32 %s112, 1
          %s397 = scalar_lea.sflag [#allocation4], %s396
          %s398 = sand.u32 %s112, 1
          %s399 = smul.addr %s398, 2
          %s400 = scalar_lea.vmem [#allocation7], %s399
          %401 = dma.done %s397, 32
        $region52: #{tpu_custom_call.1} parent=47 // pred_fallthru
          _
      $region48: #{tpu_custom_call.1} parent=5 // pred_fallthru
        _
    $region6: #{tpu_custom_call.1} parent=1 // loop_footer
      %s21 = sadd.s32 1, %s17
    $region7: #{tpu_custom_call.1} parent=1 // loop_footer_branch
      %16 = sbr.rel target = $region3
    $region8: #{tpu_custom_call.1} parent=1 // loop_exit
      _
    %402 = vsyncpa [#allocation3], 1
    %s403 = scalar_lea.sflag [#allocation3], 1
    %404 = vsyncpa %s403, 1
    %405 = vsyncpa [#allocation6], 1
    %s406 = scalar_lea.sflag [#allocation6], 1
    %407 = vsyncpa %s406, 1
    %408 = vsyncpa [#allocation4], 1
    %s409 = scalar_lea.sflag [#allocation4], 1
    %410 = vsyncpa %s409, 1

</llo_original>
